<compile_context>
chip_gen: v6e
topology: v6e:2x2x1
jax: 0.10.0
libtpu: 0.0.40
codegen_flags: <defaults>
</compile_context>

<pallas_src>
import functools
import math

import jax
import jax.numpy as jnp
from jax.experimental import pallas as pl
from jax.experimental.pallas import tpu as pltpu


_VMEM_LIMIT_BYTES = 48 * 1024 * 1024  # safe on v5e/v6e (128 MiB) and v7x (64 MiB)


# ----------------------------------------------------------------------------
# Helpers
# ----------------------------------------------------------------------------
def _pick_tile(dim, candidates):
    """Largest candidate tile that evenly divides `dim`, else the full dim."""
    for c in candidates:
        if c <= dim and dim % c == 0:
            return c
    return dim


# ----------------------------------------------------------------------------
# Tiled, pipelined linear kernel: y = x @ w + b   (bf16 operands, f32 accumulate)
# ----------------------------------------------------------------------------
def _linear_kernel(x_ref, w_ref, b_ref, o_ref, acc_ref):
    k = pl.program_id(2)

    @pl.when(k == 0)
    def _():
        acc_ref[...] = jnp.zeros_like(acc_ref)

    acc_ref[...] += jnp.dot(x_ref[...], w_ref[...],
                            preferred_element_type=jnp.float32)

    @pl.when(k == pl.num_programs(2) - 1)
    def _():
        o_ref[...] = (acc_ref[...] + b_ref[...]).astype(o_ref.dtype)


def pallas_linear(x, w, b, *, tm=256, tn=512, tk=1024):
    """x: (M, K) bf16, w: (K, N) bf16, b: (N,) f32 -> (M, N) in x.dtype."""
    M, K = x.shape
    Kw, N = w.shape
    assert K == Kw

    tm = _pick_tile(M, (tm, 128, 64, 32, 16, 8))
    tn = _pick_tile(N, (tn, 256, 128))
    tk = _pick_tile(K, (tk, 512, 256, 128))

    grid = (M // tm, N // tn, K // tk)

    return pl.pallas_call(
        _linear_kernel,
        out_shape=jax.ShapeDtypeStruct((M, N), x.dtype),
        grid_spec=pltpu.PrefetchScalarGridSpec(
            num_scalar_prefetch=0,
            grid=grid,
            in_specs=[
                pl.BlockSpec((tm, tk), lambda i, j, k: (i, k)),
                pl.BlockSpec((tk, tn), lambda i, j, k: (k, j)),
                pl.BlockSpec((1, tn), lambda i, j, k: (0, j)),
            ],
            out_specs=pl.BlockSpec((tm, tn), lambda i, j, k: (i, j)),
            scratch_shapes=[pltpu.VMEM((tm, tn), jnp.float32)],
        ),
        compiler_params=pltpu.CompilerParams(
            dimension_semantics=("parallel", "parallel", "arbitrary"),
            vmem_limit_bytes=_VMEM_LIMIT_BYTES),
    )(x, w, b.astype(jnp.float32).reshape(1, N))


# ----------------------------------------------------------------------------
# Flash attention kernel (online softmax over KV blocks, heads split in-kernel,
# head-major scratch so all per-head scratch updates are leading-axis indexed)
# ----------------------------------------------------------------------------
def _flash_attn_kernel(q_ref, k_ref, v_ref, o_ref, m_ref, l_ref, acc_ref, *,
                       num_heads, head_dim):
    # q_ref/o_ref: (TQ, H*D)     k_ref/v_ref: (TKV, H*D)
    # scratch:   m_ref/l_ref: (H, TQ, 1) f32     acc_ref: (H, TQ, D) f32
    kv = pl.program_id(2)
    last_kv = pl.num_programs(2) - 1

    @pl.when(kv == 0)
    def _():
        m_ref[...] = jnp.full_like(m_ref, -jnp.inf)
        l_ref[...] = jnp.zeros_like(l_ref)
        acc_ref[...] = jnp.zeros_like(acc_ref)

    q = q_ref[...]     # already scaled: sm_scale folded into the q projection
    k = k_ref[...]
    v = v_ref[...]

    H, D = num_heads, head_dim

    for h in range(H):
        sl = slice(h * D, (h + 1) * D)
        q_h = q[:, sl]
        k_h = k[:, sl]
        v_h = v[:, sl]

        m_h, l_h, acc_h = m_ref.at[h], l_ref.at[h], acc_ref.at[h]

        # scores: contract last dims of q and k directly (no explicit transpose)
        s = jax.lax.dot_general(
            q_h, k_h, (((1,), (1,)), ((), ())),
            preferred_element_type=jnp.float32)            # (TQ, TKV) f32

        m_prev = m_h[...]                                  # (TQ, 1)
        l_prev = l_h[...]
        m_cur = jnp.max(s, axis=-1, keepdims=True)
        m_new = jnp.maximum(m_prev, m_cur)
        alpha = jnp.exp(m_prev - m_new)                    # rescale factor
        p = jnp.exp(s - m_new)                             # (TQ, TKV) f32

        l_h[...] = alpha * l_prev + jnp.sum(p, axis=-1, keepdims=True)
        acc_h[...] = alpha * acc_h[...] + jax.lax.dot_general(
            p.astype(v_h.dtype), v_h, (((1,), (0,)), ((), ())),
            preferred_element_type=jnp.float32)            # (TQ, D) f32
        m_h[...] = m_new

    @pl.when(kv == last_kv)
    def _():
        # Runs once per q block: normalize each head (approx reciprocal + one
        # Newton step on the EUP) and emit a single lane-dense (TQ, H*D) store.
        pieces = []
        for h in range(H):
            l_h = l_ref[h]                                 # (TQ, 1)
            inv = pl.reciprocal(l_h, approx=True)
            inv = inv * (2.0 - l_h * inv)                  # Newton refinement
            pieces.append(acc_ref[h] * inv)                # (TQ, D)
        o_ref[...] = jnp.concatenate(pieces, axis=-1).astype(o_ref.dtype)


def pallas_flash_attention(q, k, v, *, num_heads, tq=128, tkv=256):
    """q, k, v: (B, S, H*D) -> o: (B, S, H*D). sm_scale must already be folded in."""
    B, S, Hd = q.shape
    assert Hd % num_heads == 0
    D = Hd // num_heads

    tq = _pick_tile(S, (tq, 64, 32, 16, 8))
    tkv = _pick_tile(S, (tkv, 128, 64, 32, 16, 8))
    grid = (B, S // tq, S // tkv)

    qo_spec = pl.BlockSpec((pl.Squeezed(), tq, Hd), lambda b, qi, ki: (b, qi, 0))
    # TODO(synk): on v7x, sweep pipeline_mode=pl.Buffered(3) on kv_spec if the
    # trace shows exposed DMA once tkv <= 256.
    kv_spec = pl.BlockSpec((pl.Squeezed(), tkv, Hd), lambda b, qi, ki: (b, ki, 0))

    kernel = functools.partial(_flash_attn_kernel, num_heads=num_heads, head_dim=D)

    itemsize = jnp.dtype(q.dtype).itemsize
    n_q_blocks = S // tq
    cost = pl.CostEstimate(
        flops=4 * B * num_heads * S * S * D,
        transcendentals=B * num_heads * S * S,
        # q read once + o written once; k/v re-streamed once per q block.
        bytes_accessed=(2 * q.size + n_q_blocks * (k.size + v.size)) * itemsize,
    )

    return pl.pallas_call(
        kernel,
        out_shape=jax.ShapeDtypeStruct((B, S, Hd), q.dtype),
        grid_spec=pltpu.PrefetchScalarGridSpec(
            num_scalar_prefetch=0,
            grid=grid,
            in_specs=[qo_spec, kv_spec, kv_spec],
            out_specs=qo_spec,
            scratch_shapes=[
                pltpu.VMEM((num_heads, tq, 1), jnp.float32),  # running max m
                pltpu.VMEM((num_heads, tq, 1), jnp.float32),  # running sum l
                pltpu.VMEM((num_heads, tq, D), jnp.float32),  # output accumulator
            ],
        ),
        compiler_params=pltpu.CompilerParams(
            dimension_semantics=("parallel", "parallel", "arbitrary"),
            vmem_limit_bytes=_VMEM_LIMIT_BYTES),
        cost_estimate=cost,
    )(q, k, v)


# ----------------------------------------------------------------------------
# Module-equivalent wrapper
# ----------------------------------------------------------------------------
class FlashAttentionPallas:
    def __init__(self, hidden_dim, num_heads, key, dropout=0.0,
                 compute_dtype=jnp.bfloat16):
        self.hidden_dim = hidden_dim
        self.num_heads = num_heads
        self.head_dim = hidden_dim // num_heads
        self.scaling = self.head_dim ** (-0.5)
        self.compute_dtype = compute_dtype
        # TODO(synk): dropout is unused in the reference forward pass; ignored here.

        # Deterministic init mimicking torch.nn.Linear (uniform +/- 1/sqrt(fan_in)).
        bound = 1.0 / math.sqrt(hidden_dim)
        keys = jax.random.split(key, 8)

        def init_linear(kw, kb, scale=1.0):
            w = jax.random.uniform(kw, (hidden_dim, hidden_dim),
                                   jnp.float32, -bound, bound)
            b = jax.random.uniform(kb, (hidden_dim,), jnp.float32, -bound, bound)
            # Weights stored bf16 (MXU operands); biases kept f32 (added in the
            # f32 GEMM epilogue).
            return (w * scale).astype(compute_dtype), (b * scale).astype(jnp.float32)

        # sm_scale folded into the q projection: (x@Wq + bq) * s == x@(Wq*s) + bq*s
        self.wq, self.bq = init_linear(keys[0], keys[1], scale=self.scaling)
        self.wk, self.bk = init_linear(keys[2], keys[3])
        self.wv, self.bv = init_linear(keys[4], keys[5])
        self.wo, self.bo = init_linear(keys[6], keys[7])

    def __call__(self, q, k, v, key_padding_mask=None):
        # TODO(synk): key_padding_mask is ignored by the reference forward (the
        # Triton kernel never reads it); not implemented here either.
        in_dtype = q.dtype
        B, S, Hd = q.shape
        M = B * S
        cd = self.compute_dtype

        qx = q.reshape(M, Hd).astype(cd)
        kx = k.reshape(M, Hd).astype(cd)
        vx = v.reshape(M, Hd).astype(cd)

        # Linear projections (tiled/pipelined Pallas GEMMs), flattened to (B*S, Hd).
        qp = pallas_linear(qx, self.wq, self.bq)   # sm_scale already folded in
        kp = pallas_linear(kx, self.wk, self.bk)
        vp = pallas_linear(vx, self.wv, self.bv)

        # Flash attention directly on the (B, S, H*D) layout: the head split is
        # done inside the kernel, so no HBM transposes are needed and the output
        # comes back already merged as (B, S, H*D).
        oh = pallas_flash_attention(
            qp.reshape(B, S, Hd), kp.reshape(B, S, Hd), vp.reshape(B, S, Hd),
            num_heads=self.num_heads)

        o = pallas_linear(oh.reshape(M, Hd), self.wo, self.bo)
        return o.reshape(B, S, Hd).astype(in_dtype)


# ----------------------------------------------------------------------------
# Reference (plain JAX) for sanity checking — mirrors the module math
# (bf16 weights / bf16 activation casts between stages, f32 accumulation).
# ----------------------------------------------------------------------------
def reference_forward(mod, q, k, v):
    f32 = jnp.float32
    cd = mod.compute_dtype
    B, S, Hd = q.shape
    H, D = mod.num_heads, mod.head_dim

    def lin(x, w, b):
        return x.astype(cd).astype(f32) @ w.astype(f32) + b

    qp = lin(q.reshape(B * S, Hd), mod.wq, mod.bq)   # scaling already folded in
    kp = lin(k.reshape(B * S, Hd), mod.wk, mod.bk)
    vp = lin(v.reshape(B * S, Hd), mod.wv, mod.bv)

    def heads(x):
        return x.astype(cd).astype(f32).reshape(B, S, H, D).transpose(0, 2, 1, 3)

    qh, kh, vh = heads(qp), heads(kp), heads(vp)
    s = jnp.einsum("bhqd,bhkd->bhqk", qh, kh)
    p = jax.nn.softmax(s, axis=-1)
    o = jnp.einsum("bhqk,bhkd->bhqd", p, vh)
    o = o.transpose(0, 2, 1, 3).reshape(B * S, Hd)
    o = lin(o, mod.wo, mod.bo)
    return o.reshape(B, S, Hd).astype(q.dtype)


if __name__ == "__main__":
    hidden_dim, num_heads = 32, 4
    batch, seq = 2, 8

    key = jax.random.PRNGKey(0)
    kparam, kq, kk, kv = jax.random.split(key, 4)

    mod = FlashAttentionPallas(hidden_dim, num_heads, kparam)

    q = jax.random.normal(kq, (batch, seq, hidden_dim), jnp.float32)
    k = jax.random.normal(kk, (batch, seq, hidden_dim), jnp.float32)
    v = jax.random.normal(kv, (batch, seq, hidden_dim), jnp.float32)

    out = mod(q, k, v)
    out = jax.block_until_ready(out)

    ref = reference_forward(mod, q, k, v)
    assert out.shape == (batch, seq, hidden_dim)
    # Tolerance covers the bf16 probability downcast in PV and the (Newton-refined)
    # approximate reciprocal at finalize; everything else matches the reference math.
    assert jnp.allclose(out, ref, atol=2e-2, rtol=2e-2), "mismatch vs reference"

    print("KERNEL_OK")
</pallas_src>

<mosaic_0001>
module attributes {stable_mosaic.version = 11 : i64} {
  func.func @_linear_kernel(%arg0: i32, %arg1: i32, %arg2: i32, %arg3: memref<16x32xbf16, #tpu.memory_space<vmem>>, %arg4: memref<32x32xbf16, #tpu.memory_space<vmem>>, %arg5: memref<1x32xf32, #tpu.memory_space<vmem>>, %arg6: memref<16x32xbf16, #tpu.memory_space<vmem>>, %arg7: memref<16x32xf32, #tpu.memory_space<vmem>>) attributes {dimension_semantics = [#tpu.dimension_semantics<parallel>, #tpu.dimension_semantics<parallel>, #tpu.dimension_semantics<arbitrary>], iteration_bounds = array<i64: 1, 1, 1>, scalar_prefetch = 0 : i64, scratch_operands = 1 : i64, tpu.core_type = #tpu.core_type<tc>, window_params = [{transform_indices = @transform_0, window_bounds = array<i64: 16, 32>}, {transform_indices = @transform_1, window_bounds = array<i64: 32, 32>}, {transform_indices = @transform_2, window_bounds = array<i64: 1, 32>}, {transform_indices = @transform_3, window_bounds = array<i64: 16, 32>}]} {
    %c0_i32 = arith.constant 0 : i32
    %0 = arith.cmpi eq, %arg2, %c0_i32 : i32
    %1 = arith.extui %0 : i1 to i32
    %c0_i32_0 = arith.constant 0 : i32
    %2 = arith.cmpi ne, %1, %c0_i32_0 : i32
    scf.if %2 {
      %cst_10 = arith.constant 0.000000e+00 : f32
      %12 = vector.broadcast %cst_10 : f32 to vector<16x32xf32>
      %c0_11 = arith.constant 0 : index
      %c0_12 = arith.constant 0 : index
      %13 = vector.load %arg7[%c0_11, %c0_12] : memref<16x32xf32, #tpu.memory_space<vmem>>, vector<16x32xf32>
      tpu.vector_store %arg7[%c0_11, %c0_12], %12 {strides = array<i32>} : memref<16x32xf32, #tpu.memory_space<vmem>>, vector<16x32xf32>,
    } else {
    }
    %c0 = arith.constant 0 : index
    %c0_1 = arith.constant 0 : index
    %3 = vector.load %arg7[%c0, %c0_1] : memref<16x32xf32, #tpu.memory_space<vmem>>, vector<16x32xf32>
    %c0_2 = arith.constant 0 : index
    %c0_3 = arith.constant 0 : index
    %4 = vector.load %arg3[%c0_2, %c0_3] : memref<16x32xbf16, #tpu.memory_space<vmem>>, vector<16x32xbf16>
    %c0_4 = arith.constant 0 : index
    %c0_5 = arith.constant 0 : index
    %5 = vector.load %arg4[%c0_4, %c0_5] : memref<32x32xbf16, #tpu.memory_space<vmem>>, vector<32x32xbf16>
    %cst = arith.constant dense<0.000000e+00> : vector<16x32xf32>
    %6 = tpu.matmul %4, %5, %cst {dimension_numbers = #tpu.dot_dimension_numbers<[1], [0], [0], [1], [0, 0, 1, 1], [], []>} : vector<16x32xbf16>, vector<32x32xbf16>, vector<16x32xf32> -> vector<16x32xf32>
    %7 = arith.addf %3, %6 : vector<16x32xf32>
    %c0_6 = arith.constant 0 : index
    %c0_7 = arith.constant 0 : index
    %8 = vector.load %arg7[%c0_6, %c0_7] : memref<16x32xf32, #tpu.memory_space<vmem>>, vector<16x32xf32>
    tpu.vector_store %arg7[%c0_6, %c0_7], %7 {strides = array<i32>} : memref<16x32xf32, #tpu.memory_space<vmem>>, vector<16x32xf32>,
    %c0_i32_8 = arith.constant 0 : i32
    %9 = arith.cmpi eq, %arg2, %c0_i32_8 : i32
    %10 = arith.extui %9 : i1 to i32
    %c0_i32_9 = arith.constant 0 : i32
    %11 = arith.cmpi ne, %10, %c0_i32_9 : i32
    scf.if %11 {
      %c0_10 = arith.constant 0 : index
      %c0_11 = arith.constant 0 : index
      %12 = vector.load %arg7[%c0_10, %c0_11] : memref<16x32xf32, #tpu.memory_space<vmem>>, vector<16x32xf32>
      %c0_12 = arith.constant 0 : index
      %c0_13 = arith.constant 0 : index
      %13 = vector.load %arg5[%c0_12, %c0_13] : memref<1x32xf32, #tpu.memory_space<vmem>>, vector<1x32xf32>
      %14 = vector.broadcast %13 : vector<1x32xf32> to vector<16x32xf32>
      %15 = arith.addf %12, %14 : vector<16x32xf32>
      %16 = arith.truncf %15 : vector<16x32xf32> to vector<16x32xbf16>
      %c0_14 = arith.constant 0 : index
      %c0_15 = arith.constant 0 : index
      %17 = vector.load %arg6[%c0_14, %c0_15] : memref<16x32xbf16, #tpu.memory_space<vmem>>, vector<16x32xbf16>
      tpu.vector_store %arg6[%c0_14, %c0_15], %16 {strides = array<i32>} : memref<16x32xbf16, #tpu.memory_space<vmem>>, vector<16x32xbf16>,
    } else {
    }
    return
  }
  func.func @transform_0(%arg0: i32, %arg1: i32, %arg2: i32) -> (i32, i32) {
    %c0_i32 = arith.constant 0 : i32
    return %arg0, %arg2 : i32, i32
  }
  func.func @transform_1(%arg0: i32, %arg1: i32, %arg2: i32) -> (i32, i32) {
    %c0_i32 = arith.constant 0 : i32
    return %arg2, %arg1 : i32, i32
  }
  func.func @transform_2(%arg0: i32, %arg1: i32, %arg2: i32) -> (i32, i32) {
    %c0_i32 = arith.constant 0 : i32
    %c0_i32_0 = arith.constant 0 : i32
    return %c0_i32, %arg1 : i32, i32
  }
  func.func @transform_3(%arg0: i32, %arg1: i32, %arg2: i32) -> (i32, i32) {
    %c0_i32 = arith.constant 0 : i32
    return %arg0, %arg1 : i32, i32
  }
}

</mosaic_0001>

<llo_original>
// kernel: tpu_custom_call.1
$region0: #{tpu_custom_call.1}
  #allocation0 [shape = 'u32[]', space=smem, size = 0x4, offset = 0x4, fixed_abs, tag = 'smem constant byte address 0x4 - core index']
  #allocation1 [shape = 'u32[144,128]{1,0:T(1,128)}', space=vmem, size = 0x12000, scoped, tag = 'internal scratch']
  #allocation2 [shape = 'f32[16,32]{1,0:T(8,128)}', space=vmem, size = 0x2000, scoped, tag = 'scratch operand']
  %s0 = inlined_call_operand.hbm [shape: bf16[16,32], index: 0, kind: input, shape index: {}]
  %s1 = inlined_call_operand.hbm [shape: bf16[32,32], index: 1, kind: input, shape index: {}]
  %s2 = inlined_call_operand.vmem [shape: f32[1,32], index: 2, kind: input, shape index: {}]
  %s3 = inlined_call_operand.hbm [shape: bf16[16,32], index: 3, kind: output, shape index: {}]
  %s4 = sld [smem:[#allocation0]]
  $region38: #{tpu_custom_call.1} parent=0
    _
  %s6 = ssub.s32 1, %s4
  %s7 = scalar_select 0, %s6, %s4
  $region1: #{tpu_custom_call.1} parent=0
    #allocation3 [shape = 'u8[4096]{0}', space=vmem, size = 0x1000, scoped, tag = 'input window, operand 0, single buffered']
    #allocation4 [shape = 's32[1]{0}', space=sflag, size = 0x4, scoped, tag = 'scoped memory for tpu_custom_call.1']
    #allocation5 [shape = 's32[1]{0}', space=sflag, size = 0x4, scoped, tag = 'scoped memory for tpu_custom_call.1']
    #allocation6 [shape = 'u8[8192]{0}', space=vmem, size = 0x2000, scoped, tag = 'input window, operand 1, single buffered']
    #allocation7 [shape = 's32[1]{0}', space=sflag, size = 0x4, scoped, tag = 'scoped memory for tpu_custom_call.1']
    #allocation8 [shape = 'u8[4096]{0}', space=vmem, size = 0x1000, scoped, tag = 'output window, operand 0, single buffered']
    %8 = vsyncpa [#allocation4], 0
    %9 = vsyncpa [#allocation7], 0
    %10 = vsyncpa [#allocation5], 0
    // Predicated region
    $region2: #{tpu_custom_call.1} parent=1 // pred_check
      _
    $region3: #{tpu_custom_call.1} parent=1 // pred_check_branch
      %12 = sbr.rel (0) target = $region5
    $region4: #{tpu_custom_call.1} parent=1 // pred_region
      %s14 = ssub.s32 128, 128
      %15 = vsyncadd [#allocation4], %s14
      %s16 = sshll.u32 [#allocation3], 4
      %s17 = int_to_ptr.vmem [resolvable:$true] %s16
      %22 = dma.hbm_to_vmem [thread:$0]  %s0, 128, %s17, [#allocation4], 64, 64, 4
    $region5: #{tpu_custom_call.1} parent=1 // pred_fallthru
      _
    // Predicated region
    $region6: #{tpu_custom_call.1} parent=1 // pred_check
      _
    $region7: #{tpu_custom_call.1} parent=1 // pred_check_branch
      %24 = sbr.rel (0) target = $region9
    $region8: #{tpu_custom_call.1} parent=1 // pred_region
      %s26 = ssub.s32 256, 256
      %27 = vsyncadd [#allocation7], %s26
      %s28 = sshll.u32 [#allocation6], 4
      %s29 = int_to_ptr.vmem [resolvable:$true] %s28
      %34 = dma.hbm_to_vmem [thread:$0]  %s1, 256, %s29, [#allocation7], 64, 64, 4
    $region9: #{tpu_custom_call.1} parent=1 // pred_fallthru
      _
    // Predicated region
    $region10: #{tpu_custom_call.1} parent=1 // pred_check
      _
    $region11: #{tpu_custom_call.1} parent=1 // pred_check_branch
      %36 = sbr.rel (0) target = $region13
    $region12: #{tpu_custom_call.1} parent=1 // pred_region
      _
    $region13: #{tpu_custom_call.1} parent=1 // pred_fallthru
      _
    // Predicated region
    $region14: #{tpu_custom_call.1} parent=1 // pred_check
      _
    $region15: #{tpu_custom_call.1} parent=1 // pred_check_branch
      %38 = sbr.rel (0) target = $region17
    $region16: #{tpu_custom_call.1} parent=1 // pred_region
      %39 = dma.done [#allocation4], 128
    $region17: #{tpu_custom_call.1} parent=1 // pred_fallthru
      _
    // Predicated region
    $region18: #{tpu_custom_call.1} parent=1 // pred_check
      _
    $region19: #{tpu_custom_call.1} parent=1 // pred_check_branch
      %41 = sbr.rel (0) target = $region21
    $region20: #{tpu_custom_call.1} parent=1 // pred_region
      %42 = dma.done [#allocation7], 256
    $region21: #{tpu_custom_call.1} parent=1 // pred_fallthru
      _
    %p44 = scmp.eq.s32.totalorder 0, 0
    // Predicated region
    $region22: #{tpu_custom_call.1} parent=1 // pred_check
      %p45 = pneg %p44
    $region23: #{tpu_custom_call.1} parent=1 // pred_check_branch
      %47 = sbr.rel (%p45) target = $region25
    $region24: #{tpu_custom_call.1} parent=1 // pred_region
      %vm48 = vcmask 261120
      %49 = vst.msk [vmem:[#allocation2] sm:$0xff] %vm48, 0.0
      %50 = vst.msk [vmem:[#allocation2 + $0x8] sm:$0xff] %vm48, 0.0
    $region25: #{tpu_custom_call.1} parent=1 // pred_fallthru
      _
    %v51 = vld [vmem:[#allocation2] sm:$0xff]
    %v52 = vld [vmem:[#allocation2 + $0x8] sm:$0xff]
    %v53 = vld [vmem:[#allocation3] sm:$0xf]
    %v54 = vld [vmem:[#allocation3 + $0x4] sm:$0xf]
    %v55 = vld [vmem:[#allocation6] sm:$0xf]
    %v56 = vld [vmem:[#allocation6 + $0x4] sm:$0xf]
    %v57 = vld [vmem:[#allocation6 + $0x8] sm:$0xf]
    %v58 = vld [vmem:[#allocation6 + $0xc] sm:$0xf]
    %v61 = vunpack.c.l.b16 %v53
    %v62 = vunpack.c.l.b16 %v54
    %v63 = vpack.c.b16 %v62, %v61
    %v68 = vunpack.c.l.b16 %v55
    %v69 = vunpack.c.l.b16 %v56
    %v70 = vunpack.c.l.b16 %v57
    %v71 = vunpack.c.l.b16 %v58
    %v72 = vpack.c.b16 %v69, %v68
    %v73 = vpack.c.b16 %v71, %v70
    %vm76 = vcmask 261120
    %v78 = vsel %vm76, %v63, 0
    %80 = vmatprep.subr.bf16.mxu0 0
    %81 = vmatpush1.bf16.msra.mxu0 0
    %82 = vmatprep.subr.bf16.mxu0 0
    %83 = vmatpush1.bf16.msra.mxu0 0
    %84 = vmatprep.subr.bf16.mxu0 0
    %85 = vmatpush1.bf16.msra.mxu0 0
    %86 = vmatprep.subr.bf16.mxu0 0
    %87 = vmatpush1.bf16.msra.mxu0 0
    %88 = vmatprep.subr.bf16.mxu0 0
    %89 = vmatpush1.bf16.msra.mxu0 0
    %90 = vmatprep.subr.bf16.mxu0 0
    %91 = vmatpush1.bf16.msra.mxu0 0
    %92 = vmatprep.subr.bf16.mxu0 0
    %93 = vmatpush1.bf16.msra.mxu0 %v73
    %94 = vmatprep.subr.bf16.mxu0 0
    %95 = vmatpush1.bf16.msra.mxu0 %v72
    %96 = vmatprep.subr.bf16.mxu0 0
    %97 = vmatpush2.bf16.msra.mxu0 0
    %98 = vmatprep.subr.bf16.mxu0 0
    %99 = vmatpush2.bf16.msra.mxu0 0
    %100 = vmatprep.subr.bf16.mxu0 0
    %101 = vmatpush2.bf16.msra.mxu0 0
    %102 = vmatprep.subr.bf16.mxu0 0
    %103 = vmatpush2.bf16.msra.mxu0 0
    %104 = vmatprep.subr.bf16.mxu0 0
    %105 = vmatpush2.bf16.msra.mxu0 0
    %106 = vmatprep.subr.bf16.mxu0 0
    %107 = vmatpush2.bf16.msra.mxu0 0
    %108 = vmatprep.subr.bf16.mxu0 0
    %109 = vmatpush2.bf16.msra.mxu0 0
    %110 = vmatprep.subr.bf16.mxu0 0
    %111 = vmatpush2.bf16.msra.mxu0 0
    %112 = vmatprep.mubr.bf16.mxu0 0
    %113 = vmatmul.mubr.bf16.gmra.mxu0 %v78
    %v114 = vpop.f32.mrf.mxu0
    %v115 = vadd.f32 0.0, %v114
    %v116 = vpop.f32.mrf.mxu0
    %v117 = vpop.f32.mrf.mxu0
    %v118 = vadd.f32 0.0, %v117
    %v119 = vpop.f32.mrf.mxu0
    %120 = vdwg.mxu0
    %v121 = vadd.f32 %v51, %v115
    %v122 = vadd.f32 %v52, %v118
    %123 = vst.msk [vmem:[#allocation2] sm:$0xff] %vm76, %v121
    %124 = vst.msk [vmem:[#allocation2 + $0x8] sm:$0xff] %vm76, %v122
    // Predicated region
    $region26: #{tpu_custom_call.1} parent=1 // pred_check
      %p125 = pneg %p44
    $region27: #{tpu_custom_call.1} parent=1 // pred_check_branch
      %127 = sbr.rel (%p125) target = $region29
    $region28: #{tpu_custom_call.1} parent=1 // pred_region
      %v128 = vld [vmem:[#allocation2] sm:$0xff]
      %v129 = vld [vmem:[#allocation2 + $0x8] sm:$0xff]
      %v130 = vld [vmem:[%s2] sm:$0x1]
      %v132 = vlaneseq
      %v133 = vshrl.u32 %v132, 7
      %v134 = vsub.s32 0, %v133
      %v135 = vrot.slane %v130, %v134
      %v137 = vadd.f32 %v128, %v135
      %v138 = vadd.f32 %v129, %v135
      %v139 = vpack.c.bf16 %v138, %v137
      %v141 = vunpack.c.l.b16 %v139
      %v142 = vunpack.c.h.b16 %v139
      %v143 = vpack.c.b16 %v141, %v141
      %v144 = vpack.c.b16 %v142, %v142
      %vm147 = vcmask 257024
      %148 = vst.msk [vmem:[#allocation8] sm:$0xf] %vm147, %v143
      %149 = vst.msk [vmem:[#allocation8 + $0x4] sm:$0xf] %vm147, %v144
    $region29: #{tpu_custom_call.1} parent=1 // pred_fallthru
      _
    // Predicated region
    $region30: #{tpu_custom_call.1} parent=1 // pred_check
      _
    $region31: #{tpu_custom_call.1} parent=1 // pred_check_branch
      %151 = sbr.rel (0) target = $region33
    $region32: #{tpu_custom_call.1} parent=1 // pred_region
      %s153 = ssub.s32 128, 128
      %154 = vsyncadd [#allocation5], %s153
      %s155 = sshll.u32 [#allocation8], 4
      %s156 = int_to_ptr.vmem [resolvable:$true] %s155
      %161 = dma.vmem_to_hbm [thread:$0]  %s156, 128, %s3, [#allocation5], 64, 64, 4
    $region33: #{tpu_custom_call.1} parent=1 // pred_fallthru
      _
    // Predicated region
    $region34: #{tpu_custom_call.1} parent=1 // pred_check
      _
    $region35: #{tpu_custom_call.1} parent=1 // pred_check_branch
      %163 = sbr.rel (0) target = $region37
    $region36: #{tpu_custom_call.1} parent=1 // pred_region
      %164 = dma.done [#allocation5], 128
    $region37: #{tpu_custom_call.1} parent=1 // pred_fallthru
      _
    %165 = vsyncpa [#allocation4], 1
    %166 = vsyncpa [#allocation7], 1
    %167 = vsyncpa [#allocation5], 1

</llo_original>
